<compile_context>
chip_gen: v6e
topology: v6e:2x2x1
jax: 0.10.0
libtpu: 0.0.40
codegen_flags: <defaults>
</compile_context>

<pallas_src>
import jax
import jax.numpy as jnp
from jax.experimental import pallas as pl
from jax.experimental.pallas import tpu as pltpu


def url_classifier_kernel(
    x_ref,     # (TB, L, 8)      bf16  url char embeddings (NLC)
    num_ref,   # (TB, Nnum)      bf16
    cat_ref,   # (TB, E)         bf16  category embedding (already gathered)
    w1_ref,    # (24, 32)        bf16  Conv1d(8->32,k=3,p=1), taps stacked on K
    b1_ref,    # (1, 32)         f32
    w2_ref,    # (96, 64)        bf16  Conv1d(32->64,k=3,p=1), taps stacked on K
    b2_ref,    # (1, 64)         f32
    wn_ref,    # (Nnum, 32)      bf16  Linear(num_numeric -> 32)
    bn_ref,    # (1, 32)         f32
    wf1_ref,   # (64+32+E, 128)  bf16  rows 0:64 pre-scaled by 1/L2 (avg-pool fold)
    bf1_ref,   # (1, 128)        f32
    wf2_ref,   # (128, 1)        bf16
    bf2_ref,   # (1, 1)          f32
    out_ref,   # (TB, 1)         f32
):
    f32 = jnp.float32
    TB, L, C0 = x_ref.shape
    L2 = L // 2

    # Precomputed (1, L, 1) row masks, multiplied into the rolled copies
    # (cheaper than full-shape iota + where on the partials).
    ridx = jax.lax.broadcasted_iota(jnp.int32, (1, L, 1), 1)
    m_ge1 = (ridx >= 1).astype(f32)                       # zero row 0
    m_ltl = (ridx < L - 1).astype(f32)                    # zero row L-1
    m_ge2 = (ridx >= 2).astype(f32)                       # zero rows 0,1
    m_lt2 = (ridx < 2 * L2 - 2).astype(f32)               # zero last pooled pos
    m_even = (((ridx & 1) == 0) & (ridx < 2 * L2)).astype(f32)  # valid pooled rows

    # ---- Conv1d(8 -> 32, k=3, pad=1): ONE fused im2col matmul ----
    x = x_ref[...].astype(f32)                            # (TB, L, 8)
    xm1 = pltpu.roll(x, shift=1, axis=1) * m_ge1          # x[l-1], 0 at l=0
    xp1 = pltpu.roll(x, shift=L - 1, axis=1) * m_ltl      # x[l+1], 0 at l=L-1
    xcat = jnp.concatenate([xm1, x, xp1], axis=-1).astype(jnp.bfloat16)  # (TB,L,24)
    y1 = jnp.dot(xcat.reshape(TB * L, 3 * C0), w1_ref[...],
                 preferred_element_type=f32).reshape(TB, L, 32)
    y1 = jnp.maximum(y1 + b1_ref[...], 0.0)               # f32 (TB, L, 32)

    # ---- MaxPool1d(2) without relayout: even row l=2m holds max(y1[2m], y1[2m+1])
    ymax = jnp.maximum(y1, pltpu.roll(y1, shift=L - 1, axis=1))          # (TB,L,32)

    # ---- Conv1d(32 -> 64, k=3, pad=1) over the pooled sequence, as a dilated
    #      (stride-2 neighbour) im2col matmul at full length L.  Only even rows
    #      l = 2m < 2*L2 are valid; they are the only ones entering the avg pool.
    ym2 = pltpu.roll(ymax, shift=2, axis=1) * m_ge2       # yp[m-1] at l=2m
    yp2 = pltpu.roll(ymax, shift=L - 2, axis=1) * m_lt2   # yp[m+1] at l=2m
    zcat = jnp.concatenate([ym2, ymax, yp2], axis=-1).astype(jnp.bfloat16)  # (TB,L,96)
    y2 = jnp.dot(zcat.reshape(TB * L, 3 * 32), w2_ref[...],
                 preferred_element_type=f32).reshape(TB, L, 64)
    y2 = jnp.maximum(y2 + b2_ref[...], 0.0)               # f32 (TB, L, 64)

    # ---- AdaptiveAvgPool1d(1): sum valid even rows; 1/L2 is folded into wf1 ----
    url_sum = jnp.sum(y2 * m_even, axis=1)                # (TB, 64) f32

    # ---- numeric branch: Linear + ReLU ----
    num_feat = jnp.maximum(
        jnp.dot(num_ref[...], wn_ref[...], preferred_element_type=f32)
        + bn_ref[...], 0.0)                               # (TB, 32) f32

    # ---- classifier head: single fused (TB, 64+32+E) x (64+32+E, 128) matmul ----
    comb = jnp.concatenate(
        [url_sum.astype(jnp.bfloat16), num_feat.astype(jnp.bfloat16), cat_ref[...]],
        axis=-1)                                          # (TB, 64+32+E) bf16
    h = jnp.dot(comb, wf1_ref[...], preferred_element_type=f32) + bf1_ref[...]
    h = jnp.maximum(h, 0.0)                               # (TB, 128) f32
    # Dropout(0.5): identity in inference/eval mode.
    logits = jnp.dot(h.astype(jnp.bfloat16), wf2_ref[...],
                     preferred_element_type=f32) + bf2_ref[...]
    out_ref[...] = jax.nn.sigmoid(logits)                 # (TB, 1)


def init_params(key, num_numeric, num_categories, embed_dim):
    ks = jax.random.split(key, 12)
    w = lambda k, shape, s: jax.random.normal(k, shape, jnp.float32) * s
    comb = 64 + 32 + embed_dim
    return {
        "url_embed": w(ks[0], (256, 8), 1.0),
        "cat_embed": w(ks[1], (num_categories, embed_dim), 1.0),
        "w1": w(ks[2], (3, 8, 32), 0.2),   "b1": w(ks[3], (1, 32), 0.1),
        "w2": w(ks[4], (3, 32, 64), 0.1),  "b2": w(ks[5], (1, 64), 0.1),
        "wn": w(ks[6], (num_numeric, 32), 0.3), "bn": w(ks[7], (1, 32), 0.1),
        "wf1": w(ks[8], (comb, 128), 0.1), "bf1": w(ks[9], (1, 128), 0.1),
        "wf2": w(ks[10], (128, 1), 0.1),   "bf2": w(ks[11], (1, 1), 0.1),
    }


def url_classifier_forward(url_chars, numeric, categorical, params,
                           *, batch_tile=256, vmem_limit_bytes=None):
    # batch_tile tuning:
    #   v6e : 256-512 (set vmem_limit_bytes to ~64-96 MiB when pushing far)
    #   v5e : 128-256 (scoped VMEM default is only 16 MiB)
    #   v7x : keep per-step footprint well under 64 MiB/TC (vmem_limit <= ~48 MiB)
    #         and pick TB so Bp//TB is even so ("parallel",) fills both TCs.
    B, L = url_chars.shape
    L2 = L // 2
    E = params["cat_embed"].shape[1]

    TB = min(batch_tile, B)
    Bp = pl.cdiv(B, TB) * TB
    if Bp != B:
        pad = Bp - B
        url_chars = jnp.pad(url_chars, ((0, pad), (0, 0)))
        numeric = jnp.pad(numeric, ((0, pad), (0, 0)))
        categorical = jnp.pad(categorical, ((0, pad), (0, 0)))

    # Embedding gathers stay in the wrapper (XLA gather); bf16 halves the stream.
    # TODO(synk): an in-kernel gather of the 256x8 table has no guaranteed Mosaic
    # lowering, and a one-hot (TB*L,256) matmul would add K=256 MXU pushes against
    # the dominant MXU bottleneck, so the lookup is intentionally left to XLA.
    x_emb = params["url_embed"].astype(jnp.bfloat16)[url_chars]             # (Bp,L,8)
    cat_feat = params["cat_embed"].astype(jnp.bfloat16)[categorical[:, 0]]  # (Bp,E)
    num_f = numeric.astype(jnp.bfloat16)                                    # (Bp,Nnum)

    # Conv taps stacked along K for the fused im2col matmuls.
    w1cat = params["w1"].reshape(3 * 8, 32).astype(jnp.bfloat16)
    w2cat = params["w2"].reshape(3 * 32, 64).astype(jnp.bfloat16)
    # Fold the 1/L2 adaptive-avg-pool scale into the url rows of wf1.
    wf1 = params["wf1"]
    row_scale = jnp.where(jnp.arange(wf1.shape[0])[:, None] < 64, 1.0 / L2, 1.0)
    wf1s = (wf1 * row_scale).astype(jnp.bfloat16)

    weights = (
        w1cat, params["b1"].astype(jnp.float32),
        w2cat, params["b2"].astype(jnp.float32),
        params["wn"].astype(jnp.bfloat16), params["bn"].astype(jnp.float32),
        wf1s, params["bf1"].astype(jnp.float32),
        params["wf2"].astype(jnp.bfloat16), params["bf2"].astype(jnp.float32),
    )

    def batched_spec(shape):
        nd = len(shape)
        return pl.BlockSpec((TB,) + tuple(shape[1:]),
                            lambda i, _nd=nd: (i,) + (0,) * (_nd - 1))

    def resident_spec(a):
        nd = a.ndim
        return pl.BlockSpec(a.shape, lambda i, _nd=nd: (0,) * _nd)

    in_specs = ([batched_spec(x_emb.shape), batched_spec(num_f.shape),
                 batched_spec(cat_feat.shape)]
                + [resident_spec(w) for w in weights])

    cp = dict(dimension_semantics=("parallel",))
    if vmem_limit_bytes is not None:
        cp["vmem_limit_bytes"] = vmem_limit_bytes

    out = pl.pallas_call(
        url_classifier_kernel,
        out_shape=jax.ShapeDtypeStruct((Bp, 1), jnp.float32),
        grid=(Bp // TB,),
        in_specs=in_specs,
        out_specs=pl.BlockSpec((TB, 1), lambda i: (i, 0)),
        compiler_params=pltpu.CompilerParams(**cp),
    )(x_emb, num_f, cat_feat, *weights)
    return out[:B]


def reference_forward(url_chars, numeric, categorical, params):
    """Pure-JAX f32 reference matching the PyTorch module (eval mode)."""
    B, L = url_chars.shape
    L2 = L // 2
    x = params["url_embed"][url_chars]                                   # (B, L, 8)
    xp = jnp.pad(x, ((0, 0), (1, 1), (0, 0)))
    y1 = sum(jnp.einsum("blc,co->blo", xp[:, k:k + L, :], params["w1"][k])
             for k in range(3))
    y1 = jax.nn.relu(y1 + params["b1"])
    yp = jnp.max(y1[:, :2 * L2, :].reshape(B, L2, 2, 32), axis=2)
    ypp = jnp.pad(yp, ((0, 0), (1, 1), (0, 0)))
    y2 = sum(jnp.einsum("blc,co->blo", ypp[:, k:k + L2, :], params["w2"][k])
             for k in range(3))
    y2 = jax.nn.relu(y2 + params["b2"])
    url_feat = jnp.mean(y2, axis=1)
    num_feat = jax.nn.relu(numeric @ params["wn"] + params["bn"])
    cat_feat = params["cat_embed"][categorical[:, 0]]
    comb = jnp.concatenate([url_feat, num_feat, cat_feat], axis=1)
    h = jax.nn.relu(comb @ params["wf1"] + params["bf1"])
    logits = h @ params["wf2"] + params["bf2"]
    return jax.nn.sigmoid(logits)


if __name__ == "__main__":
    B, L = 2, 16
    num_numeric, num_categories, embed_dim = 8, 10, 16

    key = jax.random.PRNGKey(0)
    k1, k2, k3, kp = jax.random.split(key, 4)
    url_chars = jax.random.randint(k1, (B, L), 0, 256, dtype=jnp.int32)
    numeric = jax.random.normal(k2, (B, num_numeric), jnp.float32)
    categorical = jax.random.randint(k3, (B, 1), 0, num_categories, dtype=jnp.int32)

    params = init_params(kp, num_numeric, num_categories, embed_dim)

    out = url_classifier_forward(url_chars, numeric, categorical, params)
    out = jax.block_until_ready(out)
    ref = reference_forward(url_chars, numeric, categorical, params)

    assert out.shape == (B, 1) and out.dtype == jnp.float32
    assert bool(jnp.all((out >= 0.0) & (out <= 1.0)))
    assert bool(jnp.allclose(out, ref, atol=5e-2)), (out, ref)
    print("KERNEL_OK")
</pallas_src>

<mosaic_0001>
module attributes {stable_mosaic.version = 11 : i64} {
  func.func @url_classifier_kernel(%arg0: i32, %arg1: memref<2x16x8xbf16, #tpu.memory_space<vmem>>, %arg2: memref<2x8xbf16, #tpu.memory_space<vmem>>, %arg3: memref<2x16xbf16, #tpu.memory_space<vmem>>, %arg4: memref<24x32xbf16, #tpu.memory_space<vmem>>, %arg5: memref<1x32xf32, #tpu.memory_space<vmem>>, %arg6: memref<96x64xbf16, #tpu.memory_space<vmem>>, %arg7: memref<1x64xf32, #tpu.memory_space<vmem>>, %arg8: memref<8x32xbf16, #tpu.memory_space<vmem>>, %arg9: memref<1x32xf32, #tpu.memory_space<vmem>>, %arg10: memref<112x128xbf16, #tpu.memory_space<vmem>>, %arg11: memref<1x128xf32, #tpu.memory_space<vmem>>, %arg12: memref<128x1xbf16, #tpu.memory_space<vmem>>, %arg13: memref<1x1xf32, #tpu.memory_space<vmem>>, %arg14: memref<2x1xf32, #tpu.memory_space<vmem>>) attributes {dimension_semantics = [#tpu.dimension_semantics<parallel>], iteration_bounds = array<i64: 1>, scalar_prefetch = 0 : i64, scratch_operands = 0 : i64, tpu.core_type = #tpu.core_type<tc>, window_params = [{transform_indices = @transform_0, window_bounds = array<i64: 2, 16, 8>}, {transform_indices = @transform_1, window_bounds = array<i64: 2, 8>}, {transform_indices = @transform_2, window_bounds = array<i64: 2, 16>}, {pipeline_mode = #tpu.pipeline_mode<synchronous>, transform_indices = @transform_3, window_bounds = array<i64: 24, 32>}, {pipeline_mode = #tpu.pipeline_mode<synchronous>, transform_indices = @transform_4, window_bounds = array<i64: 1, 32>}, {pipeline_mode = #tpu.pipeline_mode<synchronous>, transform_indices = @transform_5, window_bounds = array<i64: 96, 64>}, {pipeline_mode = #tpu.pipeline_mode<synchronous>, transform_indices = @transform_6, window_bounds = array<i64: 1, 64>}, {pipeline_mode = #tpu.pipeline_mode<synchronous>, transform_indices = @transform_7, window_bounds = array<i64: 8, 32>}, {pipeline_mode = #tpu.pipeline_mode<synchronous>, transform_indices = @transform_8, window_bounds = array<i64: 1, 32>}, {pipeline_mode = #tpu.pipeline_mode<synchronous>, transform_indices = @transform_9, window_bounds = array<i64: 112, 128>}, {pipeline_mode = #tpu.pipeline_mode<synchronous>, transform_indices = @transform_10, window_bounds = array<i64: 1, 128>}, {pipeline_mode = #tpu.pipeline_mode<synchronous>, transform_indices = @transform_11, window_bounds = array<i64: 128, 1>}, {pipeline_mode = #tpu.pipeline_mode<synchronous>, transform_indices = @transform_12, window_bounds = array<i64: 1, 1>}, {transform_indices = @transform_13, window_bounds = array<i64: 2, 1>}]} {
    %0 = tpu.iota {dimensions = array<i32: 1>} : vector<1x16x1xi32>
    %c1_i32 = arith.constant 1 : i32
    %1 = vector.broadcast %c1_i32 : i32 to vector<1x16x1xi32>
    %2 = arith.cmpi sge, %0, %1 : vector<1x16x1xi32>
    %3 = arith.extui %2 : vector<1x16x1xi1> to vector<1x16x1xi32>
    %4 = arith.sitofp %3 : vector<1x16x1xi32> to vector<1x16x1xf32>
    %c15_i32 = arith.constant 15 : i32
    %5 = vector.broadcast %c15_i32 : i32 to vector<1x16x1xi32>
    %6 = arith.cmpi slt, %0, %5 : vector<1x16x1xi32>
    %7 = arith.extui %6 : vector<1x16x1xi1> to vector<1x16x1xi32>
    %8 = arith.sitofp %7 : vector<1x16x1xi32> to vector<1x16x1xf32>
    %c2_i32 = arith.constant 2 : i32
    %9 = vector.broadcast %c2_i32 : i32 to vector<1x16x1xi32>
    %10 = arith.cmpi sge, %0, %9 : vector<1x16x1xi32>
    %11 = arith.extui %10 : vector<1x16x1xi1> to vector<1x16x1xi32>
    %12 = arith.sitofp %11 : vector<1x16x1xi32> to vector<1x16x1xf32>
    %c14_i32 = arith.constant 14 : i32
    %13 = vector.broadcast %c14_i32 : i32 to vector<1x16x1xi32>
    %14 = arith.cmpi slt, %0, %13 : vector<1x16x1xi32>
    %15 = arith.extui %14 : vector<1x16x1xi1> to vector<1x16x1xi32>
    %16 = arith.sitofp %15 : vector<1x16x1xi32> to vector<1x16x1xf32>
    %c1_i32_0 = arith.constant 1 : i32
    %17 = vector.broadcast %c1_i32_0 : i32 to vector<1x16x1xi32>
    %18 = arith.andi %0, %17 : vector<1x16x1xi32>
    %c0_i32 = arith.constant 0 : i32
    %19 = vector.broadcast %c0_i32 : i32 to vector<1x16x1xi32>
    %20 = arith.cmpi eq, %18, %19 : vector<1x16x1xi32>
    %c16_i32 = arith.constant 16 : i32
    %21 = vector.broadcast %c16_i32 : i32 to vector<1x16x1xi32>
    %22 = arith.cmpi slt, %0, %21 : vector<1x16x1xi32>
    %23 = arith.andi %20, %22 : vector<1x16x1xi1>
    %24 = arith.extui %23 : vector<1x16x1xi1> to vector<1x16x1xi32>
    %25 = arith.sitofp %24 : vector<1x16x1xi32> to vector<1x16x1xf32>
    %c0 = arith.constant 0 : index
    %c0_1 = arith.constant 0 : index
    %c0_2 = arith.constant 0 : index
    %26 = vector.load %arg1[%c0, %c0_1, %c0_2] : memref<2x16x8xbf16, #tpu.memory_space<vmem>>, vector<2x16x8xbf16>
    %27 = arith.extf %26 : vector<2x16x8xbf16> to vector<2x16x8xf32>
    %c1_i32_3 = arith.constant 1 : i32
    %28 = tpu.dynamic_rotate %27 by %c1_i32_3 dim 1 : vector<2x16x8xf32>, i32 -> vector<2x16x8xf32>
    %29 = vector.broadcast %4 : vector<1x16x1xf32> to vector<2x16x8xf32>
    %30 = arith.mulf %28, %29 : vector<2x16x8xf32>
    %c15_i32_4 = arith.constant 15 : i32
    %31 = tpu.dynamic_rotate %27 by %c15_i32_4 dim 1 : vector<2x16x8xf32>, i32 -> vector<2x16x8xf32>
    %32 = vector.broadcast %8 : vector<1x16x1xf32> to vector<2x16x8xf32>
    %33 = arith.mulf %31, %32 : vector<2x16x8xf32>
    %34 = tpu.concatenate %30, %27, %33 in 2 : vector<2x16x8xf32>, vector<2x16x8xf32>, vector<2x16x8xf32> -> vector<2x16x24xf32>
    %35 = arith.truncf %34 : vector<2x16x24xf32> to vector<2x16x24xbf16>
    %36 = vector.shape_cast %35 : vector<2x16x24xbf16> to vector<32x24xbf16>
    %c0_5 = arith.constant 0 : index
    %c0_6 = arith.constant 0 : index
    %37 = vector.load %arg4[%c0_5, %c0_6] : memref<24x32xbf16, #tpu.memory_space<vmem>>, vector<24x32xbf16>
    %cst = arith.constant dense<0.000000e+00> : vector<32x32xf32>
    %38 = tpu.matmul %36, %37, %cst {dimension_numbers = #tpu.dot_dimension_numbers<[1], [0], [0], [1], [0, 0, 1, 1], [], []>} : vector<32x24xbf16>, vector<24x32xbf16>, vector<32x32xf32> -> vector<32x32xf32>
    %39 = vector.shape_cast %38 : vector<32x32xf32> to vector<2x16x32xf32>
    %c0_7 = arith.constant 0 : index
    %c0_8 = arith.constant 0 : index
    %40 = vector.load %arg5[%c0_7, %c0_8] : memref<1x32xf32, #tpu.memory_space<vmem>>, vector<1x32xf32>
    %41 = vector.shape_cast %40 : vector<1x32xf32> to vector<1x1x32xf32>
    %42 = vector.broadcast %41 : vector<1x1x32xf32> to vector<2x16x32xf32>
    %43 = arith.addf %39, %42 : vector<2x16x32xf32>
    %cst_9 = arith.constant 0.000000e+00 : f32
    %44 = vector.broadcast %cst_9 : f32 to vector<2x16x32xf32>
    %45 = arith.maximumf %43, %44 : vector<2x16x32xf32>
    %c15_i32_10 = arith.constant 15 : i32
    %46 = tpu.dynamic_rotate %45 by %c15_i32_10 dim 1 : vector<2x16x32xf32>, i32 -> vector<2x16x32xf32>
    %47 = arith.maximumf %45, %46 : vector<2x16x32xf32>
    %c2_i32_11 = arith.constant 2 : i32
    %48 = tpu.dynamic_rotate %47 by %c2_i32_11 dim 1 : vector<2x16x32xf32>, i32 -> vector<2x16x32xf32>
    %49 = vector.broadcast %12 : vector<1x16x1xf32> to vector<2x16x32xf32>
    %50 = arith.mulf %48, %49 : vector<2x16x32xf32>
    %c14_i32_12 = arith.constant 14 : i32
    %51 = tpu.dynamic_rotate %47 by %c14_i32_12 dim 1 : vector<2x16x32xf32>, i32 -> vector<2x16x32xf32>
    %52 = vector.broadcast %16 : vector<1x16x1xf32> to vector<2x16x32xf32>
    %53 = arith.mulf %51, %52 : vector<2x16x32xf32>
    %54 = tpu.concatenate %50, %47, %53 in 2 : vector<2x16x32xf32>, vector<2x16x32xf32>, vector<2x16x32xf32> -> vector<2x16x96xf32>
    %55 = arith.truncf %54 : vector<2x16x96xf32> to vector<2x16x96xbf16>
    %56 = vector.shape_cast %55 : vector<2x16x96xbf16> to vector<32x96xbf16>
    %c0_13 = arith.constant 0 : index
    %c0_14 = arith.constant 0 : index
    %57 = vector.load %arg6[%c0_13, %c0_14] : memref<96x64xbf16, #tpu.memory_space<vmem>>, vector<96x64xbf16>
    %cst_15 = arith.constant dense<0.000000e+00> : vector<32x64xf32>
    %58 = tpu.matmul %56, %57, %cst_15 {dimension_numbers = #tpu.dot_dimension_numbers<[1], [0], [0], [1], [0, 0, 1, 1], [], []>} : vector<32x96xbf16>, vector<96x64xbf16>, vector<32x64xf32> -> vector<32x64xf32>
    %59 = vector.shape_cast %58 : vector<32x64xf32> to vector<2x16x64xf32>
    %c0_16 = arith.constant 0 : index
    %c0_17 = arith.constant 0 : index
    %60 = vector.load %arg7[%c0_16, %c0_17] : memref<1x64xf32, #tpu.memory_space<vmem>>, vector<1x64xf32>
    %61 = vector.shape_cast %60 : vector<1x64xf32> to vector<1x1x64xf32>
    %62 = vector.broadcast %61 : vector<1x1x64xf32> to vector<2x16x64xf32>
    %63 = arith.addf %59, %62 : vector<2x16x64xf32>
    %cst_18 = arith.constant 0.000000e+00 : f32
    %64 = vector.broadcast %cst_18 : f32 to vector<2x16x64xf32>
    %65 = arith.maximumf %63, %64 : vector<2x16x64xf32>
    %66 = vector.broadcast %25 : vector<1x16x1xf32> to vector<2x16x64xf32>
    %67 = arith.mulf %65, %66 : vector<2x16x64xf32>
    %cst_19 = arith.constant dense<0.000000e+00> : vector<2x64xf32>
    %68 = vector.multi_reduction <add>, %67, %cst_19 [1] : vector<2x16x64xf32> to vector<2x64xf32>
    %c0_20 = arith.constant 0 : index
    %c0_21 = arith.constant 0 : index
    %69 = vector.load %arg2[%c0_20, %c0_21] : memref<2x8xbf16, #tpu.memory_space<vmem>>, vector<2x8xbf16>
    %c0_22 = arith.constant 0 : index
    %c0_23 = arith.constant 0 : index
    %70 = vector.load %arg8[%c0_22, %c0_23] : memref<8x32xbf16, #tpu.memory_space<vmem>>, vector<8x32xbf16>
    %cst_24 = arith.constant dense<0.000000e+00> : vector<2x32xf32>
    %71 = tpu.matmul %69, %70, %cst_24 {dimension_numbers = #tpu.dot_dimension_numbers<[1], [0], [0], [1], [0, 0, 1, 1], [], []>} : vector<2x8xbf16>, vector<8x32xbf16>, vector<2x32xf32> -> vector<2x32xf32>
    %c0_25 = arith.constant 0 : index
    %c0_26 = arith.constant 0 : index
    %72 = vector.load %arg9[%c0_25, %c0_26] : memref<1x32xf32, #tpu.memory_space<vmem>>, vector<1x32xf32>
    %73 = vector.broadcast %72 : vector<1x32xf32> to vector<2x32xf32>
    %74 = arith.addf %71, %73 : vector<2x32xf32>
    %cst_27 = arith.constant 0.000000e+00 : f32
    %75 = vector.broadcast %cst_27 : f32 to vector<2x32xf32>
    %76 = arith.maximumf %74, %75 : vector<2x32xf32>
    %77 = arith.truncf %68 : vector<2x64xf32> to vector<2x64xbf16>
    %78 = arith.truncf %76 : vector<2x32xf32> to vector<2x32xbf16>
    %c0_28 = arith.constant 0 : index
    %c0_29 = arith.constant 0 : index
    %79 = vector.load %arg3[%c0_28, %c0_29] : memref<2x16xbf16, #tpu.memory_space<vmem>>, vector<2x16xbf16>
    %80 = tpu.concatenate %77, %78, %79 in 1 : vector<2x64xbf16>, vector<2x32xbf16>, vector<2x16xbf16> -> vector<2x112xbf16>
    %c0_30 = arith.constant 0 : index
    %c0_31 = arith.constant 0 : index
    %81 = vector.load %arg10[%c0_30, %c0_31] : memref<112x128xbf16, #tpu.memory_space<vmem>>, vector<112x128xbf16>
    %cst_32 = arith.constant dense<0.000000e+00> : vector<2x128xf32>
    %82 = tpu.matmul %80, %81, %cst_32 {dimension_numbers = #tpu.dot_dimension_numbers<[1], [0], [0], [1], [0, 0, 1, 1], [], []>} : vector<2x112xbf16>, vector<112x128xbf16>, vector<2x128xf32> -> vector<2x128xf32>
    %c0_33 = arith.constant 0 : index
    %c0_34 = arith.constant 0 : index
    %83 = vector.load %arg11[%c0_33, %c0_34] : memref<1x128xf32, #tpu.memory_space<vmem>>, vector<1x128xf32>
    %84 = vector.broadcast %83 : vector<1x128xf32> to vector<2x128xf32>
    %85 = arith.addf %82, %84 : vector<2x128xf32>
    %cst_35 = arith.constant 0.000000e+00 : f32
    %86 = vector.broadcast %cst_35 : f32 to vector<2x128xf32>
    %87 = arith.maximumf %85, %86 : vector<2x128xf32>
    %88 = arith.truncf %87 : vector<2x128xf32> to vector<2x128xbf16>
    %c0_36 = arith.constant 0 : index
    %c0_37 = arith.constant 0 : index
    %89 = vector.load %arg12[%c0_36, %c0_37] : memref<128x1xbf16, #tpu.memory_space<vmem>>, vector<128x1xbf16>
    %cst_38 = arith.constant dense<0.000000e+00> : vector<2x1xf32>
    %90 = tpu.matmul %88, %89, %cst_38 {dimension_numbers = #tpu.dot_dimension_numbers<[1], [0], [0], [1], [0, 0, 1, 1], [], []>} : vector<2x128xbf16>, vector<128x1xbf16>, vector<2x1xf32> -> vector<2x1xf32>
    %c0_39 = arith.constant 0 : index
    %c0_40 = arith.constant 0 : index
    %91 = vector.load %arg13[%c0_39, %c0_40] : memref<1x1xf32, #tpu.memory_space<vmem>>, vector<1x1xf32>
    %92 = vector.broadcast %91 : vector<1x1xf32> to vector<2x1xf32>
    %93 = arith.addf %90, %92 : vector<2x1xf32>
    %94 = arith.negf %93 : vector<2x1xf32>
    %95 = math.exp %94 : vector<2x1xf32>
    %cst_41 = arith.constant 1.000000e+00 : f32
    %96 = vector.broadcast %cst_41 : f32 to vector<2x1xf32>
    %97 = arith.addf %96, %95 : vector<2x1xf32>
    %98 = arith.divf %96, %97 : vector<2x1xf32>
    %c0_42 = arith.constant 0 : index
    %c0_43 = arith.constant 0 : index
    %99 = vector.load %arg14[%c0_42, %c0_43] : memref<2x1xf32, #tpu.memory_space<vmem>>, vector<2x1xf32>
    tpu.vector_store %arg14[%c0_42, %c0_43], %98 {strides = array<i32>} : memref<2x1xf32, #tpu.memory_space<vmem>>, vector<2x1xf32>,
    return
  }
  func.func @transform_0(%arg0: i32) -> (i32, i32, i32) {
    %c0_i32 = arith.constant 0 : i32
    %c0_i32_0 = arith.constant 0 : i32
    %c0_i32_1 = arith.constant 0 : i32
    return %arg0, %c0_i32, %c0_i32_0 : i32, i32, i32
  }
  func.func @transform_1(%arg0: i32) -> (i32, i32) {
    %c0_i32 = arith.constant 0 : i32
    %c0_i32_0 = arith.constant 0 : i32
    return %arg0, %c0_i32 : i32, i32
  }
  func.func @transform_2(%arg0: i32) -> (i32, i32) {
    %c0_i32 = arith.constant 0 : i32
    %c0_i32_0 = arith.constant 0 : i32
    return %arg0, %c0_i32 : i32, i32
  }
  func.func @transform_3(%arg0: i32) -> (i32, i32) {
    %c0_i32 = arith.constant 0 : i32
    %c0_i32_0 = arith.constant 0 : i32
    %c0_i32_1 = arith.constant 0 : i32
    return %c0_i32, %c0_i32_0 : i32, i32
  }
  func.func @transform_4(%arg0: i32) -> (i32, i32) {
    %c0_i32 = arith.constant 0 : i32
    %c0_i32_0 = arith.constant 0 : i32
    %c0_i32_1 = arith.constant 0 : i32
    return %c0_i32, %c0_i32_0 : i32, i32
  }
  func.func @transform_5(%arg0: i32) -> (i32, i32) {
    %c0_i32 = arith.constant 0 : i32
    %c0_i32_0 = arith.constant 0 : i32
    %c0_i32_1 = arith.constant 0 : i32
    return %c0_i32, %c0_i32_0 : i32, i32
  }
  func.func @transform_6(%arg0: i32) -> (i32, i32) {
    %c0_i32 = arith.constant 0 : i32
    %c0_i32_0 = arith.constant 0 : i32
    %c0_i32_1 = arith.constant 0 : i32
    return %c0_i32, %c0_i32_0 : i32, i32
  }
  func.func @transform_7(%arg0: i32) -> (i32, i32) {
    %c0_i32 = arith.constant 0 : i32
    %c0_i32_0 = arith.constant 0 : i32
    %c0_i32_1 = arith.constant 0 : i32
    return %c0_i32, %c0_i32_0 : i32, i32
  }
  func.func @transform_8(%arg0: i32) -> (i32, i32) {
    %c0_i32 = arith.constant 0 : i32
    %c0_i32_0 = arith.constant 0 : i32
    %c0_i32_1 = arith.constant 0 : i32
    return %c0_i32, %c0_i32_0 : i32, i32
  }
  func.func @transform_9(%arg0: i32) -> (i32, i32) {
    %c0_i32 = arith.constant 0 : i32
    %c0_i32_0 = arith.constant 0 : i32
    %c0_i32_1 = arith.constant 0 : i32
    return %c0_i32, %c0_i32_0 : i32, i32
  }
  func.func @transform_10(%arg0: i32) -> (i32, i32) {
    %c0_i32 = arith.constant 0 : i32
    %c0_i32_0 = arith.constant 0 : i32
    %c0_i32_1 = arith.constant 0 : i32
    return %c0_i32, %c0_i32_0 : i32, i32
  }
  func.func @transform_11(%arg0: i32) -> (i32, i32) {
    %c0_i32 = arith.constant 0 : i32
    %c0_i32_0 = arith.constant 0 : i32
    %c0_i32_1 = arith.constant 0 : i32
    return %c0_i32, %c0_i32_0 : i32, i32
  }
  func.func @transform_12(%arg0: i32) -> (i32, i32) {
    %c0_i32 = arith.constant 0 : i32
    %c0_i32_0 = arith.constant 0 : i32
    %c0_i32_1 = arith.constant 0 : i32
    return %c0_i32, %c0_i32_0 : i32, i32
  }
  func.func @transform_13(%arg0: i32) -> (i32, i32) {
    %c0_i32 = arith.constant 0 : i32
    %c0_i32_0 = arith.constant 0 : i32
    return %arg0, %c0_i32 : i32, i32
  }
}

</mosaic_0001>

<llo_original>
// kernel: tpu_custom_call.1
$region0: #{tpu_custom_call.1}
  #allocation0 [shape = 'u32[]', space=smem, size = 0x4, offset = 0x4, fixed_abs, tag = 'smem constant byte address 0x4 - core index']
  #allocation1 [shape = 'u32[144,128]{1,0:T(1,128)}', space=vmem, size = 0x12000, scoped, tag = 'internal scratch']
  #allocation2 [shape = 'f32[1,1]{1,0:T(1,128)S(1)}', space=vmem, size = 0x200, scoped, tag = 'scoped memory for tpu_custom_call.1']
  %s0 = inlined_call_operand.vmem [shape: bf16[2,16,8], index: 0, kind: input, shape index: {}]
  %s1 = inlined_call_operand.vmem [shape: bf16[2,8], index: 1, kind: input, shape index: {}]
  %s2 = inlined_call_operand.vmem [shape: bf16[2,16], index: 2, kind: input, shape index: {}]
  %s3 = inlined_call_operand.vmem [shape: bf16[24,32], index: 3, kind: input, shape index: {}]
  %s4 = inlined_call_operand.vmem [shape: f32[1,32], index: 4, kind: input, shape index: {}]
  %s5 = inlined_call_operand.vmem [shape: bf16[96,64], index: 5, kind: input, shape index: {}]
  %s6 = inlined_call_operand.vmem [shape: f32[1,64], index: 6, kind: input, shape index: {}]
  %s7 = inlined_call_operand.vmem [shape: bf16[8,32], index: 7, kind: input, shape index: {}]
  %s8 = inlined_call_operand.vmem [shape: f32[1,32], index: 8, kind: input, shape index: {}]
  %s9 = inlined_call_operand.vmem [shape: bf16[112,128], index: 9, kind: input, shape index: {}]
  %s10 = inlined_call_operand.vmem [shape: f32[1,128], index: 10, kind: input, shape index: {}]
  %s11 = inlined_call_operand.vmem [shape: bf16[128,1], index: 11, kind: input, shape index: {}]
  %s12 = inlined_call_operand.<no memory space> [shape: f32[1,1], index: 12, kind: input, shape index: {}]
  %s13 = inlined_call_operand.vmem [shape: f32[2,1], index: 13, kind: output, shape index: {}]
  %s14 = sld [smem:[#allocation0]]
  $region62: #{tpu_custom_call.1} parent=0
    _
  %s16 = ssub.s32 1, %s14
  %s17 = scalar_select 0, %s16, %s14
  %v18 = vstv %s12
  %19 = vst [vmem:[#allocation2] sm:$0x1] %v18
  // Predicated region
  $region2: #{tpu_custom_call.1} parent=0 // pred_check
    _
  $region3: #{tpu_custom_call.1} parent=0 // pred_check_branch
    %21 = sbr.rel (0) target = $region5
  $region4: #{tpu_custom_call.1} parent=0 // pred_region
    _
  $region5: #{tpu_custom_call.1} parent=0 // pred_fallthru
    _
  // Predicated region
  $region6: #{tpu_custom_call.1} parent=0 // pred_check
    _
  $region7: #{tpu_custom_call.1} parent=0 // pred_check_branch
    %23 = sbr.rel (0) target = $region9
  $region8: #{tpu_custom_call.1} parent=0 // pred_region
    _
  $region9: #{tpu_custom_call.1} parent=0 // pred_fallthru
    _
  // Predicated region
  $region10: #{tpu_custom_call.1} parent=0 // pred_check
    _
  $region11: #{tpu_custom_call.1} parent=0 // pred_check_branch
    %25 = sbr.rel (0) target = $region13
  $region12: #{tpu_custom_call.1} parent=0 // pred_region
    _
  $region13: #{tpu_custom_call.1} parent=0 // pred_fallthru
    _
  // Predicated region
  $region14: #{tpu_custom_call.1} parent=0 // pred_check
    _
  $region15: #{tpu_custom_call.1} parent=0 // pred_check_branch
    %27 = sbr.rel (0) target = $region17
  $region16: #{tpu_custom_call.1} parent=0 // pred_region
    _
  $region17: #{tpu_custom_call.1} parent=0 // pred_fallthru
    _
  // Predicated region
  $region18: #{tpu_custom_call.1} parent=0 // pred_check
    _
  $region19: #{tpu_custom_call.1} parent=0 // pred_check_branch
    %29 = sbr.rel (0) target = $region21
  $region20: #{tpu_custom_call.1} parent=0 // pred_region
    _
  $region21: #{tpu_custom_call.1} parent=0 // pred_fallthru
    _
  // Predicated region
  $region22: #{tpu_custom_call.1} parent=0 // pred_check
    _
  $region23: #{tpu_custom_call.1} parent=0 // pred_check_branch
    %31 = sbr.rel (0) target = $region25
  $region24: #{tpu_custom_call.1} parent=0 // pred_region
    _
  $region25: #{tpu_custom_call.1} parent=0 // pred_fallthru
    _
  // Predicated region
  $region26: #{tpu_custom_call.1} parent=0 // pred_check
    _
  $region27: #{tpu_custom_call.1} parent=0 // pred_check_branch
    %33 = sbr.rel (0) target = $region29
  $region28: #{tpu_custom_call.1} parent=0 // pred_region
    _
  $region29: #{tpu_custom_call.1} parent=0 // pred_fallthru
    _
  // Predicated region
  $region30: #{tpu_custom_call.1} parent=0 // pred_check
    _
  $region31: #{tpu_custom_call.1} parent=0 // pred_check_branch
    %35 = sbr.rel (0) target = $region33
  $region32: #{tpu_custom_call.1} parent=0 // pred_region
    _
  $region33: #{tpu_custom_call.1} parent=0 // pred_fallthru
    _
  // Predicated region
  $region34: #{tpu_custom_call.1} parent=0 // pred_check
    _
  $region35: #{tpu_custom_call.1} parent=0 // pred_check_branch
    %37 = sbr.rel (0) target = $region37
  $region36: #{tpu_custom_call.1} parent=0 // pred_region
    _
  $region37: #{tpu_custom_call.1} parent=0 // pred_fallthru
    _
  // Predicated region
  $region38: #{tpu_custom_call.1} parent=0 // pred_check
    _
  $region39: #{tpu_custom_call.1} parent=0 // pred_check_branch
    %39 = sbr.rel (0) target = $region41
  $region40: #{tpu_custom_call.1} parent=0 // pred_region
    _
  $region41: #{tpu_custom_call.1} parent=0 // pred_fallthru
    _
  // Predicated region
  $region42: #{tpu_custom_call.1} parent=0 // pred_check
    _
  $region43: #{tpu_custom_call.1} parent=0 // pred_check_branch
    %41 = sbr.rel (0) target = $region45
  $region44: #{tpu_custom_call.1} parent=0 // pred_region
    _
  $region45: #{tpu_custom_call.1} parent=0 // pred_fallthru
    _
  // Predicated region
  $region46: #{tpu_custom_call.1} parent=0 // pred_check
    _
  $region47: #{tpu_custom_call.1} parent=0 // pred_check_branch
    %43 = sbr.rel (0) target = $region49
  $region48: #{tpu_custom_call.1} parent=0 // pred_region
    _
  $region49: #{tpu_custom_call.1} parent=0 // pred_fallthru
    _
  // Predicated region
  $region50: #{tpu_custom_call.1} parent=0 // pred_check
    _
  $region51: #{tpu_custom_call.1} parent=0 // pred_check_branch
    %45 = sbr.rel (0) target = $region53
  $region52: #{tpu_custom_call.1} parent=0 // pred_region
    _
  $region53: #{tpu_custom_call.1} parent=0 // pred_fallthru
    _
  %v47 = vlaneseq
  %v48 = vshrl.u32 %v47, 7
  %v49 = vadd.s32 %v48, 8
  %vm50 = vcmp.ge.s32.totalorder %v48, 1
  %vm51 = vcmp.ge.s32.totalorder %v49, 1
  %v52 = vsel %vm50, 1, 0
  %v53 = vsel %vm51, 1, 0
  %v54 = vcvt.s32.f32 %v52
  %v55 = vcvt.s32.f32 %v53
  %vm56 = vcmp.lt.s32.totalorder %v48, 15
  %vm57 = vcmp.lt.s32.totalorder %v49, 15
  %v58 = vsel %vm56, 1, 0
  %v59 = vsel %vm57, 1, 0
  %v60 = vcvt.s32.f32 %v58
  %v61 = vcvt.s32.f32 %v59
  %vm62 = vcmp.ge.s32.totalorder %v48, 2
  %vm63 = vcmp.ge.s32.totalorder %v49, 2
  %v64 = vsel %vm62, 1, 0
  %v65 = vsel %vm63, 1, 0
  %v66 = vcvt.s32.f32 %v64
  %v67 = vcvt.s32.f32 %v65
  %vm68 = vcmp.lt.s32.totalorder %v48, 14
  %vm69 = vcmp.lt.s32.totalorder %v49, 14
  %v70 = vsel %vm68, 1, 0
  %v71 = vsel %vm69, 1, 0
  %v72 = vcvt.s32.f32 %v70
  %v73 = vcvt.s32.f32 %v71
  %v74 = vand.u32 %v48, 1
  %v75 = vand.u32 %v49, 1
  %vm76 = vcmp.eq.s32.totalorder %v74, 0
  %vm77 = vcmp.eq.s32.totalorder %v75, 0
  %vm78 = vcmp.lt.s32.totalorder %v48, 16
  %vm79 = vcmp.lt.s32.totalorder %v49, 16
  %vm80 = vmand %vm76, %vm78
  %vm81 = vmand %vm77, %vm79
  %v82 = vsel %vm80, 1, 0
  %v83 = vsel %vm81, 1, 0
  %v84 = vcvt.s32.f32 %v82
  %v85 = vcvt.s32.f32 %v83
  %v86 = vld [vmem:[%s0] sm:$0xf]
  %v87 = vld [vmem:[%s0 + $0x4] sm:$0xf]
  %v88 = vld [vmem:[%s0 + $0x8] sm:$0xf]
  %v89 = vld [vmem:[%s0 + $0xc] sm:$0xf]
  %v90 = vunpack.c.l.bf16 %v86
  %v91 = vunpack.c.l.bf16 %v87
  %v92 = vunpack.c.l.bf16 %v88
  %v93 = vunpack.c.l.bf16 %v89
  %v94 = vrot.slane %v90, 7
  %v95 = vrot.slane %v92, 7
  %v96 = vrot.slane %v91, 7
  %v97 = vrot.slane %v93, 7
  %vm98 = vcmp.lt.s32.totalorder %v48, 1
  %v99 = vsel %vm98, %v94, %v96
  %v100 = vsel %vm98, %v95, %v97
  %v101 = vsel %vm98, %v96, %v94
  %v102 = vsel %vm98, %v97, %v95
  %v103 = vmul.f32 %v101, %v54
  %v104 = vmul.f32 %v99, %v55
  %v105 = vmul.f32 %v102, %v54
  %v106 = vmul.f32 %v100, %v55
  %v107 = vrot.slane %v90, 1
  %v108 = vrot.slane %v92, 1
  %v109 = vrot.slane %v91, 1
  %v110 = vrot.slane %v93, 1
  %vm111 = vcmp.lt.s32.totalorder %v48, 7
  %v112 = vsel %vm111, %v107, %v109
  %v113 = vsel %vm111, %v108, %v110
  %v114 = vsel %vm111, %v109, %v107
  %v115 = vsel %vm111, %v110, %v108
  %v116 = vmul.f32 %v112, %v60
  %v117 = vmul.f32 %v114, %v61
  %v118 = vmul.f32 %v113, %v60
  %v119 = vmul.f32 %v115, %v61
  %124 = vrot.lane.b32.xlu0 %v90, 8
  %v125 = vpop.permute.xlu0 %124
  %126 = vrot.lane.b32.xlu0 %v91, 8
  %v127 = vpop.permute.xlu0 %126
  %128 = vrot.lane.b32.xlu0 %v92, 8
  %v129 = vpop.permute.xlu0 %128
  %130 = vrot.lane.b32.xlu0 %v93, 8
  %v131 = vpop.permute.xlu0 %130
  %140 = vrot.lane.b32.xlu0 %v116, 16
  %v141 = vpop.permute.xlu0 %140
  %142 = vrot.lane.b32.xlu0 %v117, 16
  %v143 = vpop.permute.xlu0 %142
  %144 = vrot.lane.b32.xlu0 %v118, 16
  %v145 = vpop.permute.xlu0 %144
  %146 = vrot.lane.b32.xlu0 %v119, 16
  %v147 = vpop.permute.xlu0 %146
  %vm152 = vcmask 64512
  %v153 = vsel %vm152, %v103, %v125
  %v154 = vsel %vm152, %v104, %v127
  %v155 = vsel %vm152, %v105, %v129
  %v156 = vsel %vm152, %v106, %v131
  %vm157 = vcmask 130048
  %v158 = vsel %vm157, %v153, %v141
  %v159 = vsel %vm157, %v154, %v143
  %v160 = vsel %vm157, %v155, %v145
  %v161 = vsel %vm157, %v156, %v147
  %v162 = vpack.c.bf16 %v159, %v158
  %v163 = vpack.c.bf16 %v161, %v160
  %v164 = vld [vmem:[%s3] sm:$0xf]
  %v165 = vld [vmem:[%s3 + $0x4] sm:$0xf]
  %v166 = vld [vmem:[%s3 + $0x8] sm:$0xf]
  %v170 = vunpack.c.l.b16 %v164
  %v171 = vunpack.c.l.b16 %v165
  %v172 = vunpack.c.l.b16 %v166
  %v173 = vpack.c.b16 %v171, %v170
  %v174 = vpack.c.b16 %v172, %v172
  %vm176 = vcmask 195584
  %v178 = vsel %vm176, %v162, 0
  %v181 = vsel %vm176, %v163, 0
  %vm183 = vcmask 1043456
  %v185 = vsel %vm183, %v174, 0
  %187 = vmatprep.subr.bf16.mxu0 0
  %188 = vmatpush1.bf16.msra.mxu0 0
  %189 = vmatprep.subr.bf16.mxu0 0
  %190 = vmatpush1.bf16.msra.mxu0 0
  %191 = vmatprep.subr.bf16.mxu0 0
  %192 = vmatpush1.bf16.msra.mxu0 0
  %193 = vmatprep.subr.bf16.mxu0 0
  %194 = vmatpush1.bf16.msra.mxu0 0
  %195 = vmatprep.subr.bf16.mxu0 0
  %196 = vmatpush1.bf16.msra.mxu0 0
  %197 = vmatprep.subr.bf16.mxu0 0
  %198 = vmatpush1.bf16.msra.mxu0 0
  %199 = vmatprep.subr.bf16.mxu0 0
  %200 = vmatpush1.bf16.msra.mxu0 %v185
  %201 = vmatprep.subr.bf16.mxu0 0
  %202 = vmatpush1.bf16.msra.mxu0 %v173
  %203 = vmatprep.subr.bf16.mxu0 0
  %204 = vmatpush2.bf16.msra.mxu0 0
  %205 = vmatprep.subr.bf16.mxu0 0
  %206 = vmatpush2.bf16.msra.mxu0 0
  %207 = vmatprep.subr.bf16.mxu0 0
  %208 = vmatpush2.bf16.msra.mxu0 0
  %209 = vmatprep.subr.bf16.mxu0 0
  %210 = vmatpush2.bf16.msra.mxu0 0
  %211 = vmatprep.subr.bf16.mxu0 0
  %212 = vmatpush2.bf16.msra.mxu0 0
  %213 = vmatprep.subr.bf16.mxu0 0
  %214 = vmatpush2.bf16.msra.mxu0 0
  %215 = vmatprep.subr.bf16.mxu0 0
  %216 = vmatpush2.bf16.msra.mxu0 0
  %217 = vmatprep.subr.bf16.mxu0 0
  %218 = vmatpush2.bf16.msra.mxu0 0
  %219 = vmatprep.mubr.bf16.mxu0 0
  %220 = vmatmul.mubr.bf16.gmra.mxu0 %v178
  %v221 = vpop.f32.mrf.mxu0
  %v222 = vadd.f32 0.0, %v221
  %v223 = vpop.f32.mrf.mxu0
  %v224 = vpop.f32.mrf.mxu0
  %v225 = vadd.f32 0.0, %v224
  %v226 = vpop.f32.mrf.mxu0
  %227 = vmatprep.mubr.bf16.mxu0 0
  %228 = vmatmul.mubr.bf16.gmra.mxu0 %v181
  %v229 = vpop.f32.mrf.mxu0
  %v230 = vadd.f32 0.0, %v229
  %v231 = vpop.f32.mrf.mxu0
  %v232 = vpop.f32.mrf.mxu0
  %v233 = vadd.f32 0.0, %v232
  %v234 = vpop.f32.mrf.mxu0
  %235 = vdwg.mxu0
  %v236 = vld [vmem:[%s4] sm:$0x1]
  %v238 = vlaneseq
  %v239 = vshrl.u32 %v238, 7
  %v240 = vsub.s32 0, %v239
  %v241 = vrot.slane %v236, %v240
  %v243 = vadd.f32 %v222, %v241
  %v244 = vadd.f32 %v225, %v241
  %v245 = vadd.f32 %v230, %v241
  %v246 = vadd.f32 %v233, %v241
  %v247 = vmax.f32 %v243, 0.0
  %v248 = vmax.f32 %v244, 0.0
  %v249 = vmax.f32 %v245, 0.0
  %v250 = vmax.f32 %v246, 0.0
  %v251 = vrot.slane %v247, 1
  %v252 = vrot.slane %v249, 1
  %v253 = vrot.slane %v248, 1
  %v254 = vrot.slane %v250, 1
  %v255 = vsel %vm111, %v251, %v253
  %v256 = vsel %vm111, %v252, %v254
  %v257 = vsel %vm111, %v253, %v251
  %v258 = vsel %vm111, %v254, %v252
  %v259 = vmax.f32 %v247, %v255
  %v260 = vmax.f32 %v248, %v257
  %v261 = vmax.f32 %v249, %v256
  %v262 = vmax.f32 %v250, %v258
  %v263 = vrot.slane %v259, 6
  %v264 = vrot.slane %v261, 6
  %v265 = vrot.slane %v260, 6
  %v266 = vrot.slane %v262, 6
  %vm267 = vcmp.lt.s32.totalorder %v48, 2
  %v268 = vsel %vm267, %v263, %v265
  %v269 = vsel %vm267, %v264, %v266
  %v270 = vsel %vm267, %v265, %v263
  %v271 = vsel %vm267, %v266, %v264
  %v272 = vmul.f32 %v270, %v66
  %v273 = vmul.f32 %v268, %v67
  %v274 = vmul.f32 %v271, %v66
  %v275 = vmul.f32 %v269, %v67
  %v276 = vrot.slane %v259, 2
  %v277 = vrot.slane %v261, 2
  %v278 = vrot.slane %v260, 2
  %v279 = vrot.slane %v262, 2
  %vm280 = vcmp.lt.s32.totalorder %v48, 6
  %v281 = vsel %vm280, %v276, %v278
  %v282 = vsel %vm280, %v277, %v279
  %v283 = vsel %vm280, %v278, %v276
  %v284 = vsel %vm280, %v279, %v277
  %v285 = vmul.f32 %v281, %v72
  %v286 = vmul.f32 %v283, %v73
  %v287 = vmul.f32 %v282, %v72
  %v288 = vmul.f32 %v284, %v73
  %293 = vrot.lane.b32.xlu0 %v259, 32
  %v294 = vpop.permute.xlu0 %293
  %295 = vrot.lane.b32.xlu0 %v260, 32
  %v296 = vpop.permute.xlu0 %295
  %297 = vrot.lane.b32.xlu0 %v261, 32
  %v298 = vpop.permute.xlu0 %297
  %299 = vrot.lane.b32.xlu0 %v262, 32
  %v300 = vpop.permute.xlu0 %299
  %309 = vrot.lane.b32.xlu0 %v285, 64
  %v310 = vpop.permute.xlu0 %309
  %311 = vrot.lane.b32.xlu0 %v286, 64
  %v312 = vpop.permute.xlu0 %311
  %313 = vrot.lane.b32.xlu0 %v287, 64
  %v314 = vpop.permute.xlu0 %313
  %315 = vrot.lane.b32.xlu0 %v288, 64
  %v316 = vpop.permute.xlu0 %315
  %vm321 = vcmask 261120
  %v322 = vsel %vm321, %v272, %v294
  %v323 = vsel %vm321, %v273, %v296
  %v324 = vsel %vm321, %v274, %v298
  %v325 = vsel %vm321, %v275, %v300
  %vm326 = vcmask 523264
  %v327 = vsel %vm326, %v322, %v310
  %v328 = vsel %vm326, %v323, %v312
  %v329 = vsel %vm326, %v324, %v314
  %v330 = vsel %vm326, %v325, %v316
  %v331 = vpack.c.bf16 %v328, %v327
  %v332 = vpack.c.bf16 %v330, %v329
  %v333 = vld [vmem:[%s5] sm:$0xf]
  %v334 = vld [vmem:[%s5 + $0x4] sm:$0xf]
  %v335 = vld [vmem:[%s5 + $0x8] sm:$0xf]
  %v336 = vld [vmem:[%s5 + $0xc] sm:$0xf]
  %v337 = vld [vmem:[%s5 + $0x10] sm:$0xf]
  %v338 = vld [vmem:[%s5 + $0x14] sm:$0xf]
  %v339 = vld [vmem:[%s5 + $0x18] sm:$0xf]
  %v340 = vld [vmem:[%s5 + $0x1c] sm:$0xf]
  %v341 = vld [vmem:[%s5 + $0x20] sm:$0xf]
  %v342 = vld [vmem:[%s5 + $0x24] sm:$0xf]
  %v343 = vld [vmem:[%s5 + $0x28] sm:$0xf]
  %v344 = vld [vmem:[%s5 + $0x2c] sm:$0xf]
  %v357 = vunpack.c.l.b16 %v333
  %v358 = vunpack.c.l.b16 %v334
  %v359 = vunpack.c.l.b16 %v335
  %v360 = vunpack.c.l.b16 %v336
  %v361 = vunpack.c.l.b16 %v337
  %v362 = vunpack.c.l.b16 %v338
  %v363 = vunpack.c.l.b16 %v339
  %v364 = vunpack.c.l.b16 %v340
  %v365 = vunpack.c.l.b16 %v341
  %v366 = vunpack.c.l.b16 %v342
  %v367 = vunpack.c.l.b16 %v343
  %v368 = vunpack.c.l.b16 %v344
  %v369 = vpack.c.b16 %v358, %v357
  %v370 = vpack.c.b16 %v360, %v359
  %v371 = vpack.c.b16 %v362, %v361
  %v372 = vpack.c.b16 %v364, %v363
  %v373 = vpack.c.b16 %v366, %v365
  %v374 = vpack.c.b16 %v368, %v367
  %vm381 = vcmask 785408
  %v383 = vsel %vm381, %v331, 0
  %v386 = vsel %vm381, %v332, 0
  %388 = vmatprep.subr.bf16.mxu0 0
  %389 = vmatpush1.bf16.msra.mxu0 0
  %390 = vmatprep.subr.bf16.mxu0 0
  %391 = vmatpush1.bf16.msra.mxu0 0
  %392 = vmatprep.subr.bf16.mxu0 0
  %393 = vmatpush1.bf16.msra.mxu0 %v374
  %394 = vmatprep.subr.bf16.mxu0 0
  %395 = vmatpush1.bf16.msra.mxu0 %v373
  %396 = vmatprep.subr.bf16.mxu0 0
  %397 = vmatpush1.bf16.msra.mxu0 %v372
  %398 = vmatprep.subr.bf16.mxu0 0
  %399 = vmatpush1.bf16.msra.mxu0 %v371
  %400 = vmatprep.subr.bf16.mxu0 0
  %401 = vmatpush1.bf16.msra.mxu0 %v370
  %402 = vmatprep.subr.bf16.mxu0 0
  %403 = vmatpush1.bf16.msra.mxu0 %v369
  %404 = vmatprep.subr.bf16.mxu0 0
  %405 = vmatpush2.bf16.msra.mxu0 0
  %406 = vmatprep.subr.bf16.mxu0 0
  %407 = vmatpush2.bf16.msra.mxu0 0
  %408 = vmatprep.subr.bf16.mxu0 0
  %409 = vmatpush2.bf16.msra.mxu0 0
  %410 = vmatprep.subr.bf16.mxu0 0
  %411 = vmatpush2.bf16.msra.mxu0 0
  %412 = vmatprep.subr.bf16.mxu0 0
  %413 = vmatpush2.bf16.msra.mxu0 0
  %414 = vmatprep.subr.bf16.mxu0 0
  %415 = vmatpush2.bf16.msra.mxu0 0
  %416 = vmatprep.subr.bf16.mxu0 0
  %417 = vmatpush2.bf16.msra.mxu0 0
  %418 = vmatprep.subr.bf16.mxu0 0
  %419 = vmatpush2.bf16.msra.mxu0 0
  %420 = vmatprep.mubr.bf16.mxu0 0
  %421 = vmatmul.mubr.bf16.gmra.mxu0 %v383
  %v422 = vpop.f32.mrf.mxu0
  %v423 = vadd.f32 0.0, %v422
  %v424 = vpop.f32.mrf.mxu0
  %v425 = vpop.f32.mrf.mxu0
  %v426 = vadd.f32 0.0, %v425
  %v427 = vpop.f32.mrf.mxu0
  %428 = vmatprep.mubr.bf16.mxu0 0
  %429 = vmatmul.mubr.bf16.gmra.mxu0 %v386
  %v430 = vpop.f32.mrf.mxu0
  %v431 = vadd.f32 0.0, %v430
  %v432 = vpop.f32.mrf.mxu0
  %v433 = vpop.f32.mrf.mxu0
  %v434 = vadd.f32 0.0, %v433
  %v435 = vpop.f32.mrf.mxu0
  %436 = vdwg.mxu0
  %v437 = vld [vmem:[%s6] sm:$0x1]
  %v439 = vlaneseq
  %v440 = vshrl.u32 %v439, 7
  %v441 = vsub.s32 0, %v440
  %v442 = vrot.slane %v437, %v441
  %v444 = vadd.f32 %v423, %v442
  %v445 = vadd.f32 %v426, %v442
  %v446 = vadd.f32 %v431, %v442
  %v447 = vadd.f32 %v434, %v442
  %v448 = vmax.f32 %v444, 0.0
  %v449 = vmax.f32 %v445, 0.0
  %v450 = vmax.f32 %v446, 0.0
  %v451 = vmax.f32 %v447, 0.0
  %v452 = vmul.f32 %v448, %v84
  %v453 = vmul.f32 %v449, %v85
  %v454 = vmul.f32 %v450, %v84
  %v455 = vmul.f32 %v451, %v85
  %v456 = vsel %vm326, %v452, 0.0
  %v457 = vsel %vm326, %v453, 0.0
  %v458 = vadd.f32 %v456, %v457
  %v459 = vrot.slane %v458, 4
  %v460 = vadd.f32 %v458, %v459
  %v461 = vrot.slane %v460, 2
  %v462 = vadd.f32 %v460, %v461
  %v463 = vrot.slane %v462, 1
  %v464 = vadd.f32 %v462, %v463
  %v465 = vsel %vm326, %v454, 0.0
  %v466 = vsel %vm326, %v455, 0.0
  %v467 = vadd.f32 %v465, %v466
  %v468 = vrot.slane %v467, 4
  %v469 = vadd.f32 %v467, %v468
  %v470 = vrot.slane %v469, 2
  %v471 = vadd.f32 %v469, %v470
  %v472 = vrot.slane %v471, 1
  %v473 = vadd.f32 %v471, %v472
  %v474 = vld [vmem:[%s1] sm:$0x1]
  %v475 = vld [vmem:[%s7] sm:$0xf]
  %v476 = vld [vmem:[%s8] sm:$0x1]
  %v478 = vlaneseq
  %v479 = vshrl.u32 %v478, 7
  %v480 = vsub.s32 0, %v479
  %v481 = vrot.slane %v476, %v480
  %v484 = vsel %vm152, %v474, 0
  %v487 = vsel %vm183, %v475, 0
  %489 = vmatprep.subr.bf16.mxu0 0
  %490 = vmatpush1.bf16.msra.mxu0 0
  %491 = vmatprep.subr.bf16.mxu0 0
  %492 = vmatpush1.bf16.msra.mxu0 0
  %493 = vmatprep.subr.bf16.mxu0 0
  %494 = vmatpush1.bf16.msra.mxu0 0
  %495 = vmatprep.subr.bf16.mxu0 0
  %496 = vmatpush1.bf16.msra.mxu0 0
  %497 = vmatprep.subr.bf16.mxu0 0
  %498 = vmatpush1.bf16.msra.mxu0 0
  %499 = vmatprep.subr.bf16.mxu0 0
  %500 = vmatpush1.bf16.msra.mxu0 0
  %501 = vmatprep.subr.bf16.mxu0 0
  %502 = vmatpush1.bf16.msra.mxu0 0
  %503 = vmatprep.subr.bf16.mxu0 0
  %504 = vmatpush1.bf16.msra.mxu0 %v487
  %505 = vmatprep.subr.bf16.mxu0 0
  %506 = vmatpush2.bf16.msra.mxu0 0
  %507 = vmatprep.subr.bf16.mxu0 0
  %508 = vmatpush2.bf16.msra.mxu0 0
  %509 = vmatprep.subr.bf16.mxu0 0
  %510 = vmatpush2.bf16.msra.mxu0 0
  %511 = vmatprep.subr.bf16.mxu0 0
  %512 = vmatpush2.bf16.msra.mxu0 0
  %513 = vmatprep.subr.bf16.mxu0 0
  %514 = vmatpush2.bf16.msra.mxu0 0
  %515 = vmatprep.subr.bf16.mxu0 0
  %516 = vmatpush2.bf16.msra.mxu0 0
  %517 = vmatprep.subr.bf16.mxu0 0
  %518 = vmatpush2.bf16.msra.mxu0 0
  %519 = vmatprep.subr.bf16.mxu0 0
  %520 = vmatpush2.bf16.msra.mxu0 0
  %521 = vmatprep.mubr.bf16.mxu0 0
  %522 = vmatmul.mubr.bf16.gmra.mxu0 %v484
  %v523 = vpop.f32.mrf.mxu0
  %v524 = vadd.f32 %v481, %v523
  %v525 = vpop.f32.mrf.mxu0
  %v526 = vpop.f32.mrf.mxu0
  %v527 = vpop.f32.mrf.mxu0
  %528 = vdwg.mxu0
  %v529 = vmax.f32 %v524, 0.0
  %v530 = vpack.c.bf16 %v464, %v464
  %v531 = vpack.c.bf16 %v473, %v473
  %v532 = vpack.c.bf16 %v529, %v529
  %v533 = vld [vmem:[%s2] sm:$0x1]
  %v536 = vunpack.c.l.b16 %v530
  %v537 = vunpack.c.l.b16 %v531
  %vm538 = vcmask 1041409
  %v539 = vsel %vm538, %v537, %v536
  %v540 = vpack.c.b16 %v539, %v539
  %542 = vrot.lane.b32.xlu0 %v532, 64
  %v543 = vpop.permute.xlu0 %542
  %v546 = vunpack.c.l.s4 1966171168
  %v547 = vunpack.c.0.s8 %v546
  %v548 = vlaneseq
  %v549 = vshrl.u32 %v548, 7
  %v550 = vsub.s32 %v547, %v549
  %v551 = vrot.slane %v533, %v550
  %v553 = vunpack.c.l.s4 1966171168
  %v554 = vunpack.c.0.s8 %v553
  %v555 = vlaneseq
  %v556 = vshrl.u32 %v555, 7
  %v557 = vsub.s32 %v554, %v556
  %v558 = vrot.slane %v551, %v557
  %559 = vrot.lane.b32.xlu0 %v558, 96
  %v560 = vpop.permute.xlu0 %559
  %v563 = vsel %vm326, %v540, %v543
  %v565 = vsel %vm381, %v563, %v560
  %v566 = vld [vmem:[%s9] sm:$0xf]
  %v567 = vld [vmem:[%s9 + $0x4] sm:$0xf]
  %v568 = vld [vmem:[%s9 + $0x8] sm:$0xf]
  %v569 = vld [vmem:[%s9 + $0xc] sm:$0xf]
  %v570 = vld [vmem:[%s9 + $0x10] sm:$0xf]
  %v571 = vld [vmem:[%s9 + $0x14] sm:$0xf]
  %v572 = vld [vmem:[%s9 + $0x18] sm:$0xf]
  %v573 = vld [vmem:[%s9 + $0x1c] sm:$0xf]
  %v574 = vld [vmem:[%s9 + $0x20] sm:$0xf]
  %v575 = vld [vmem:[%s9 + $0x24] sm:$0xf]
  %v576 = vld [vmem:[%s9 + $0x28] sm:$0xf]
  %v577 = vld [vmem:[%s9 + $0x2c] sm:$0xf]
  %v578 = vld [vmem:[%s9 + $0x30] sm:$0xf]
  %v579 = vld [vmem:[%s9 + $0x34] sm:$0xf]
  %v580 = vld [vmem:[%s10] sm:$0x1]
  %v582 = vlaneseq
  %v583 = vshrl.u32 %v582, 7
  %v584 = vsub.s32 0, %v583
  %v585 = vrot.slane %v580, %v584
  %v601 = vunpack.c.l.b16 %v566
  %v602 = vunpack.c.l.b16 %v567
  %v603 = vunpack.c.l.b16 %v568
  %v604 = vunpack.c.l.b16 %v569
  %v605 = vunpack.c.l.b16 %v570
  %v606 = vunpack.c.l.b16 %v571
  %v607 = vunpack.c.l.b16 %v572
  %v608 = vunpack.c.l.b16 %v573
  %v609 = vunpack.c.l.b16 %v574
  %v610 = vunpack.c.l.b16 %v575
  %v611 = vunpack.c.l.b16 %v576
  %v612 = vunpack.c.l.b16 %v577
  %v613 = vunpack.c.l.b16 %v578
  %v614 = vunpack.c.l.b16 %v579
  %v615 = vpack.c.b16 %v602, %v601
  %v616 = vpack.c.b16 %v604, %v603
  %v617 = vpack.c.b16 %v606, %v605
  %v618 = vpack.c.b16 %v608, %v607
  %v619 = vpack.c.b16 %v610, %v609
  %v620 = vpack.c.b16 %v612, %v611
  %v621 = vpack.c.b16 %v614, %v613
  %vm629 = vcmask 916480
  %v630 = vsel %vm629, %v565, 0
  %632 = vmatprep.subr.bf16.mxu0 0
  %633 = vmatpush1.bf16.msra.mxu0 0
  %634 = vmatprep.subr.bf16.mxu0 0
  %635 = vmatpush1.bf16.msra.mxu0 %v621
  %636 = vmatprep.subr.bf16.mxu0 0
  %637 = vmatpush1.bf16.msra.mxu0 %v620
  %638 = vmatprep.subr.bf16.mxu0 0
  %639 = vmatpush1.bf16.msra.mxu0 %v619
  %640 = vmatprep.subr.bf16.mxu0 0
  %641 = vmatpush1.bf16.msra.mxu0 %v618
  %642 = vmatprep.subr.bf16.mxu0 0
  %643 = vmatpush1.bf16.msra.mxu0 %v617
  %644 = vmatprep.subr.bf16.mxu0 0
  %645 = vmatpush1.bf16.msra.mxu0 %v616
  %646 = vmatprep.subr.bf16.mxu0 0
  %647 = vmatpush1.bf16.msra.mxu0 %v615
  %648 = vmatprep.subr.bf16.mxu0 0
  %649 = vmatpush2.bf16.msra.mxu0 0
  %650 = vmatprep.subr.bf16.mxu0 0
  %651 = vmatpush2.bf16.msra.mxu0 0
  %652 = vmatprep.subr.bf16.mxu0 0
  %653 = vmatpush2.bf16.msra.mxu0 0
  %654 = vmatprep.subr.bf16.mxu0 0
  %655 = vmatpush2.bf16.msra.mxu0 0
  %656 = vmatprep.subr.bf16.mxu0 0
  %657 = vmatpush2.bf16.msra.mxu0 0
  %658 = vmatprep.subr.bf16.mxu0 0
  %659 = vmatpush2.bf16.msra.mxu0 0
  %660 = vmatprep.subr.bf16.mxu0 0
  %661 = vmatpush2.bf16.msra.mxu0 0
  %662 = vmatprep.subr.bf16.mxu0 0
  %663 = vmatpush2.bf16.msra.mxu0 0
  %664 = vmatprep.mubr.bf16.mxu0 0
  %665 = vmatmul.mubr.bf16.gmra.mxu0 %v630
  %v666 = vpop.f32.mrf.mxu0
  %v667 = vadd.f32 %v585, %v666
  %v668 = vpop.f32.mrf.mxu0
  %v669 = vpop.f32.mrf.mxu0
  %v670 = vpop.f32.mrf.mxu0
  %671 = vdwg.mxu0
  %v672 = vmax.f32 %v667, 0.0
  %v673 = vpack.c.bf16 %v672, %v672
  %v674 = vld [vmem:[%s11] sm:$0xf]
  %v675 = vld [vmem:[%s11 + $0x4] sm:$0xf]
  %v676 = vld [vmem:[%s11 + $0x8] sm:$0xf]
  %v677 = vld [vmem:[%s11 + $0xc] sm:$0xf]
  %v678 = vld [vmem:[%s11 + $0x10] sm:$0xf]
  %v679 = vld [vmem:[%s11 + $0x14] sm:$0xf]
  %v680 = vld [vmem:[%s11 + $0x18] sm:$0xf]
  %v681 = vld [vmem:[%s11 + $0x1c] sm:$0xf]
  %v682 = vld [vmem:[%s11 + $0x20] sm:$0xf]
  %v683 = vld [vmem:[%s11 + $0x24] sm:$0xf]
  %v684 = vld [vmem:[%s11 + $0x28] sm:$0xf]
  %v685 = vld [vmem:[%s11 + $0x2c] sm:$0xf]
  %v686 = vld [vmem:[%s11 + $0x30] sm:$0xf]
  %v687 = vld [vmem:[%s11 + $0x34] sm:$0xf]
  %v688 = vld [vmem:[%s11 + $0x38] sm:$0xf]
  %v689 = vld [vmem:[%s11 + $0x3c] sm:$0xf]
  %v690 = vld [vmem:[#allocation2] sm:$0x1]
  %v692 = vlaneseq
  %v693 = vshrl.u32 %v692, 7
  %v694 = vsub.s32 0, %v693
  %v695 = vrot.slane %v690, %v694
  %v713 = vunpack.c.l.b16 %v674
  %v714 = vunpack.c.l.b16 %v675
  %v715 = vunpack.c.l.b16 %v676
  %v716 = vunpack.c.l.b16 %v677
  %v717 = vunpack.c.l.b16 %v678
  %v718 = vunpack.c.l.b16 %v679
  %v719 = vunpack.c.l.b16 %v680
  %v720 = vunpack.c.l.b16 %v681
  %v721 = vunpack.c.l.b16 %v682
  %v722 = vunpack.c.l.b16 %v683
  %v723 = vunpack.c.l.b16 %v684
  %v724 = vunpack.c.l.b16 %v685
  %v725 = vunpack.c.l.b16 %v686
  %v726 = vunpack.c.l.b16 %v687
  %v727 = vunpack.c.l.b16 %v688
  %v728 = vunpack.c.l.b16 %v689
  %v729 = vpack.c.b16 %v714, %v713
  %v730 = vpack.c.b16 %v716, %v715
  %v731 = vpack.c.b16 %v718, %v717
  %v732 = vpack.c.b16 %v720, %v719
  %v733 = vpack.c.b16 %v722, %v721
  %v734 = vpack.c.b16 %v724, %v723
  %v735 = vpack.c.b16 %v726, %v725
  %v736 = vpack.c.b16 %v728, %v727
  %745 = vmatprep.subr.bf16.mxu0 0
  %746 = vmatpush1.bf16.msra.mxu0 %v736
  %747 = vmatprep.subr.bf16.mxu0 0
  %748 = vmatpush1.bf16.msra.mxu0 %v735
  %749 = vmatprep.subr.bf16.mxu0 0
  %750 = vmatpush1.bf16.msra.mxu0 %v734
  %751 = vmatprep.subr.bf16.mxu0 0
  %752 = vmatpush1.bf16.msra.mxu0 %v733
  %753 = vmatprep.subr.bf16.mxu0 0
  %754 = vmatpush1.bf16.msra.mxu0 %v732
  %755 = vmatprep.subr.bf16.mxu0 0
  %756 = vmatpush1.bf16.msra.mxu0 %v731
  %757 = vmatprep.subr.bf16.mxu0 0
  %758 = vmatpush1.bf16.msra.mxu0 %v730
  %759 = vmatprep.subr.bf16.mxu0 0
  %760 = vmatpush1.bf16.msra.mxu0 %v729
  %761 = vmatprep.subr.bf16.mxu0 0
  %762 = vmatpush2.bf16.msra.mxu0 0
  %763 = vmatprep.subr.bf16.mxu0 0
  %764 = vmatpush2.bf16.msra.mxu0 0
  %765 = vmatprep.subr.bf16.mxu0 0
  %766 = vmatpush2.bf16.msra.mxu0 0
  %767 = vmatprep.subr.bf16.mxu0 0
  %768 = vmatpush2.bf16.msra.mxu0 0
  %769 = vmatprep.subr.bf16.mxu0 0
  %770 = vmatpush2.bf16.msra.mxu0 0
  %771 = vmatprep.subr.bf16.mxu0 0
  %772 = vmatpush2.bf16.msra.mxu0 0
  %773 = vmatprep.subr.bf16.mxu0 0
  %774 = vmatpush2.bf16.msra.mxu0 0
  %775 = vmatprep.subr.bf16.mxu0 0
  %776 = vmatpush2.bf16.msra.mxu0 0
  %777 = vmatprep.mubr.bf16.mxu0 0
  %778 = vmatmul.mubr.bf16.gmra.mxu0 %v673
  %v779 = vpop.f32.mrf.mxu0
  %v780 = vadd.f32 %v695, %v779
  %v781 = vpop.f32.mrf.mxu0
  %v782 = vpop.f32.mrf.mxu0
  %v783 = vpop.f32.mrf.mxu0
  %784 = vdwg.mxu0
  %v785 = vxor.u32 %v780, 2147483648
  %v786 = vmul.f32 %v785, 1.442695
  %v787 = vpow.pop %v786
  %v788 = vadd.f32 %v787, 1.0
  %v789 = vrcp.pop %v788
  %v790 = vmul.f32 1.0, %v789
  %vm791 = vcmask 1024
  %792 = vst.msk [vmem:[%s13] sm:$0x3] %vm791, %v790
  // Predicated region
  $region54: #{tpu_custom_call.1} parent=0 // pred_check
    _
  $region55: #{tpu_custom_call.1} parent=0 // pred_check_branch
    %794 = sbr.rel (0) target = $region57
  $region56: #{tpu_custom_call.1} parent=0 // pred_region
    _
  $region57: #{tpu_custom_call.1} parent=0 // pred_fallthru
    _
  // Predicated region
  $region58: #{tpu_custom_call.1} parent=0 // pred_check
    _
  $region59: #{tpu_custom_call.1} parent=0 // pred_check_branch
    %796 = sbr.rel (0) target = $region61
  $region60: #{tpu_custom_call.1} parent=0 // pred_region
    _
  $region61: #{tpu_custom_call.1} parent=0 // pred_fallthru
    _

</llo_original>
